<compile_context>
chip_gen: v6e
topology: v6e:2x2x1
jax: 0.10.0
libtpu: 0.0.40
codegen_flags: <defaults>
</compile_context>

<pallas_src>
import functools

import jax
import jax.numpy as jnp
from jax.experimental import pallas as pl
from jax.experimental.pallas import tpu as pltpu


_PIPELINE_MODE_OK = hasattr(pl, "Buffered")


def _lora_kernel(x_ref, wd_ref, wut_ref, o_ref):
    # x_ref  : (TM, in_features)      VMEM, original activation dtype
    # wd_ref : (rank, in_features)    VMEM, compute dtype (lane-dense)
    # wut_ref: (rank, out_features)   VMEM, compute dtype (lane-dense)
    # o_ref  : (TM, out_features)     VMEM, original activation dtype
    x = x_ref[...].astype(wd_ref.dtype)

    # down = x @ W_down.T : contract the shared last (in_features) axis of
    # both operands; the MXU handles the transposed RHS directly, so the
    # loop-invariant weight is never transposed per grid step.
    down = jax.lax.dot_general(
        x, wd_ref[...],
        dimension_numbers=(((1,), (1,)), ((), ())),
        preferred_element_type=jnp.float32)

    # up = down @ W_up.T == down @ wut   (wut pre-transposed in the wrapper)
    up = jnp.dot(down.astype(wut_ref.dtype), wut_ref[...],
                 preferred_element_type=jnp.float32)

    o_ref[...] = up.astype(o_ref.dtype)


def _round_up(x, m):
    return (x + m - 1) // m * m


def _default_vmem_limit_bytes():
    """Generation-aware VMEM limit for the Mosaic compiler."""
    cap = None
    try:
        cap = getattr(pltpu.get_tpu_info(), "vmem_capacity_bytes", None)
    except Exception:
        cap = None
    if not cap:
        return 48 * 1024 * 1024              # conservative fallback
    if cap >= 96 * 1024 * 1024:              # v5e / v6e: 128 MiB physical VMEM
        return 96 * 1024 * 1024
    return int(cap) * 5 // 8                 # v7x: 64 MiB physical -> ~40 MiB


def _plan_tiling(M, in_features, out_features, rank,
                 x_bytes, c_bytes, o_bytes, vmem_budget, sublane,
                 pipeline_mode_ok, min_steps=4):
    """Largest VMEM-friendly row tile + activation-input buffer depth."""
    # Loop-invariant weights: single-buffered when pipeline_mode is usable.
    w_mult = 1 if pipeline_mode_ok else 2
    weight_bytes = w_mult * rank * (in_features + out_features) * c_bytes
    # Per-row VMEM: double-buffered x / out tiles + the in-kernel x cast copy
    # (compute dtype) + the f32 `down` / `up` intermediates.
    per_row = 2 * (in_features * x_bytes + out_features * o_bytes)
    per_row += c_bytes * in_features + 4 * (rank + out_features)
    avail = max(vmem_budget - weight_bytes, sublane * per_row)

    tile = int(avail // per_row)
    tile = max(sublane, min(tile, 2048))
    if tile >= 256:
        tile = (tile // 256) * 256           # lane/sublane + pipeline friendly
    else:
        tile = (tile // sublane) * sublane   # packed-sublane multiple

    # Keep >= min_steps grid steps (>= 2 per v7x TensorCore) when M allows so
    # prefetch / writeback actually overlap with compute on each core.
    if M > min_steps * sublane and tile * min_steps > M:
        tile = _round_up(pl.cdiv(M, min_steps), sublane)
    tile = max(sublane, min(tile, _round_up(M, sublane)))

    # Triple-buffer the activation input if it still fits and the grid is long
    # enough to benefit (hides block-boundary DMA exposure; kernel is
    # HBM-bound).
    x_buffers = None
    if pipeline_mode_ok and pl.cdiv(M, tile) >= 3:
        used = weight_bytes + tile * per_row
        if used + tile * in_features * x_bytes <= vmem_budget:
            x_buffers = 3
    return tile, x_buffers


@functools.partial(
    jax.jit,
    static_argnames=("compute_dtype", "tile_m", "vmem_limit_bytes",
                     "x_buffers", "w_buffers"))
def _lora_forward(hidden_states, w_down, w_up, *, compute_dtype, tile_m,
                  vmem_limit_bytes, x_buffers, w_buffers):
    orig_dtype = hidden_states.dtype
    *lead, in_features = hidden_states.shape
    rank, _ = w_down.shape
    out_features, _ = w_up.shape

    # One-time prep on tiny weights: cast to compute dtype, pre-transpose W_up
    # so both weight tiles are lane-dense inside the kernel.
    wd = w_down.astype(compute_dtype)                  # (rank, in_features)
    wut = jnp.transpose(w_up).astype(compute_dtype)    # (rank, out_features)

    x2d = hidden_states.reshape(-1, in_features)       # keep orig dtype
    M = x2d.shape[0]
    grid = (pl.cdiv(M, tile_m),)                       # ragged last block OK

    x_bytes = jnp.dtype(orig_dtype).itemsize
    c_bytes = jnp.dtype(compute_dtype).itemsize

    def _spec(shape, index_map, nbuf):
        if nbuf is None:
            return pl.BlockSpec(shape, index_map)
        return pl.BlockSpec(shape, index_map, pipeline_mode=pl.Buffered(nbuf))

    cost = pl.CostEstimate(
        flops=2 * M * rank * (in_features + out_features),
        transcendentals=0,
        bytes_accessed=(M * in_features * x_bytes
                        + M * out_features * x_bytes
                        + rank * (in_features + out_features) * c_bytes))

    out2d = pl.pallas_call(
        _lora_kernel,
        out_shape=jax.ShapeDtypeStruct((M, out_features), orig_dtype),
        grid_spec=pltpu.PrefetchScalarGridSpec(
            num_scalar_prefetch=0,
            grid=grid,
            in_specs=[
                _spec((tile_m, in_features), lambda i: (i, 0), x_buffers),
                _spec((rank, in_features), lambda i: (0, 0), w_buffers),
                _spec((rank, out_features), lambda i: (0, 0), w_buffers),
            ],
            out_specs=pl.BlockSpec((tile_m, out_features), lambda i: (i, 0)),
        ),
        compiler_params=pltpu.CompilerParams(
            dimension_semantics=("parallel",),
            vmem_limit_bytes=vmem_limit_bytes,
        ),
        cost_estimate=cost,
    )(x2d, wd, wut)

    return out2d.reshape(*lead, out_features)


def lora_linear(hidden_states, w_down, w_up, *, compute_dtype=None,
                tile_m=None, vmem_limit_bytes=None):
    """LoRA linear forward.

    hidden_states: (..., in_features)
    w_down:        (rank, in_features)   -- nn.Linear weight layout
    w_up:          (out_features, rank)  -- nn.Linear weight layout
    returns:       (..., out_features) in hidden_states.dtype

    compute_dtype defaults to w_down.dtype (exact PyTorch semantics:
    x.to(down.weight.dtype)); pass e.g. jnp.bfloat16 to trade precision for
    lower-width MXU compute.
    """
    global _PIPELINE_MODE_OK

    *lead, in_features = hidden_states.shape
    rank, in_f2 = w_down.shape
    out_features, rank2 = w_up.shape
    assert in_f2 == in_features and rank2 == rank

    orig_dtype = jnp.dtype(hidden_states.dtype)
    compute_dtype = (jnp.dtype(compute_dtype) if compute_dtype is not None
                     else jnp.dtype(w_down.dtype))

    x_bytes = orig_dtype.itemsize
    c_bytes = compute_dtype.itemsize
    M = 1
    for d in lead:
        M *= int(d)

    if vmem_limit_bytes is None:
        vmem_limit_bytes = _default_vmem_limit_bytes()
    vmem_budget = int(vmem_limit_bytes * 0.85)

    # dtype-native sublane multiple: 8 for f32, 16 for bf16, 32 for int8/fp8.
    sublane = max(8, 32 // max(x_bytes, 1))

    x_buffers = None
    if tile_m is None:
        tile_m, x_buffers = _plan_tiling(
            M, in_features, out_features, rank, x_bytes, c_bytes, x_bytes,
            vmem_budget, sublane, _PIPELINE_MODE_OK)
    w_buffers = 1 if _PIPELINE_MODE_OK else None

    kwargs = dict(compute_dtype=compute_dtype, tile_m=int(tile_m),
                  vmem_limit_bytes=int(vmem_limit_bytes),
                  x_buffers=x_buffers, w_buffers=w_buffers)
    try:
        return _lora_forward(hidden_states, w_down, w_up, **kwargs)
    except Exception:
        if x_buffers is None and w_buffers is None:
            raise
        # This jax build does not accept pipeline_mode=pl.Buffered(...) on
        # grid BlockSpecs: fall back to default double-buffered specs.
        _PIPELINE_MODE_OK = False
        kwargs.update(x_buffers=None, w_buffers=None)
        return _lora_forward(hidden_states, w_down, w_up, **kwargs)


if __name__ == "__main__":
    # Small config consistent with the module.
    batch, seq = 2, 8
    in_features, out_features, rank = 32, 32, 4

    key = jax.random.PRNGKey(0)
    kx, kd, ku = jax.random.split(key, 3)

    hidden_states = jax.random.normal(
        kx, (batch, seq, in_features), dtype=jnp.float32)

    # 1) Exact PyTorch __init__: down ~ N(0, 1/rank), up = zeros -> output 0.
    w_down = (1.0 / rank) * jax.random.normal(
        kd, (rank, in_features), dtype=jnp.float32)
    w_up_zero = jnp.zeros((out_features, rank), dtype=jnp.float32)

    out = jax.block_until_ready(lora_linear(hidden_states, w_down, w_up_zero))
    assert out.shape == (batch, seq, out_features)
    assert out.dtype == hidden_states.dtype
    assert jnp.allclose(out, 0.0, atol=1e-6)

    # 2) Non-trivial up-weights: chained matmul vs pure-JAX reference.
    w_up = 0.1 * jax.random.normal(ku, (out_features, rank), dtype=jnp.float32)
    out2 = jax.block_until_ready(lora_linear(hidden_states, w_down, w_up))
    ref2 = (hidden_states.reshape(-1, in_features) @ w_down.T @ w_up.T
            ).reshape(batch, seq, out_features)
    assert jnp.allclose(out2, ref2, atol=1e-5)

    # 3) Ragged M (not a multiple of tile_m): validates the no-pad grid path.
    hs_ragged = jax.random.normal(kx, (3, 7, in_features), dtype=jnp.float32)
    out3 = jax.block_until_ready(
        lora_linear(hs_ragged, w_down, w_up, tile_m=8))
    ref3 = (hs_ragged.reshape(-1, in_features) @ w_down.T @ w_up.T
            ).reshape(3, 7, out_features)
    assert jnp.allclose(out3, ref3, atol=1e-5)

    # 4) Mixed dtypes: bf16 activations + f32 LoRA weights.  Like PyTorch,
    #    compute happens in the weight dtype (f32); output returned in bf16.
    hs_bf16 = hidden_states.astype(jnp.bfloat16)
    out4 = jax.block_until_ready(lora_linear(hs_bf16, w_down, w_up))
    ref4 = (hs_bf16.astype(jnp.float32).reshape(-1, in_features)
            @ w_down.T @ w_up.T).reshape(batch, seq, out_features
                                         ).astype(jnp.bfloat16)
    assert out4.dtype == jnp.bfloat16
    assert jnp.allclose(out4.astype(jnp.float32), ref4.astype(jnp.float32),
                        atol=5e-2)

    print("KERNEL_OK")
</pallas_src>

<mosaic_0001>
module attributes {stable_mosaic.version = 11 : i64} {
  func.func @_lora_kernel(%arg0: i32, %arg1: memref<16x32xf32, #tpu.memory_space<vmem>>, %arg2: memref<4x32xf32, #tpu.memory_space<vmem>>, %arg3: memref<4x32xf32, #tpu.memory_space<vmem>>, %arg4: memref<16x32xf32, #tpu.memory_space<vmem>>) attributes {dimension_semantics = [#tpu.dimension_semantics<parallel>], iteration_bounds = array<i64: 1>, scalar_prefetch = 0 : i64, scratch_operands = 0 : i64, tpu.core_type = #tpu.core_type<tc>, window_params = [{transform_indices = @transform_0, window_bounds = array<i64: 16, 32>}, {pipeline_mode = #tpu.pipeline_mode<synchronous>, transform_indices = @transform_1, window_bounds = array<i64: 4, 32>}, {pipeline_mode = #tpu.pipeline_mode<synchronous>, transform_indices = @transform_2, window_bounds = array<i64: 4, 32>}, {transform_indices = @transform_3, window_bounds = array<i64: 16, 32>}]} {
    %c0 = arith.constant 0 : index
    %c0_0 = arith.constant 0 : index
    %0 = vector.load %arg1[%c0, %c0_0] : memref<16x32xf32, #tpu.memory_space<vmem>>, vector<16x32xf32>
    %c0_1 = arith.constant 0 : index
    %c0_2 = arith.constant 0 : index
    %1 = vector.load %arg2[%c0_1, %c0_2] : memref<4x32xf32, #tpu.memory_space<vmem>>, vector<4x32xf32>
    %cst = arith.constant dense<0.000000e+00> : vector<16x4xf32>
    %2 = tpu.matmul %0, %1, %cst {dimension_numbers = #tpu.dot_dimension_numbers<[1], [1], [0], [0], [0, 0, 1, 0], [], []>} : vector<16x32xf32>, vector<4x32xf32>, vector<16x4xf32> -> vector<16x4xf32>
    %c0_3 = arith.constant 0 : index
    %c0_4 = arith.constant 0 : index
    %3 = vector.load %arg3[%c0_3, %c0_4] : memref<4x32xf32, #tpu.memory_space<vmem>>, vector<4x32xf32>
    %cst_5 = arith.constant dense<0.000000e+00> : vector<16x32xf32>
    %4 = tpu.matmul %2, %3, %cst_5 {dimension_numbers = #tpu.dot_dimension_numbers<[1], [0], [0], [1], [0, 0, 1, 1], [], []>} : vector<16x4xf32>, vector<4x32xf32>, vector<16x32xf32> -> vector<16x32xf32>
    %c0_6 = arith.constant 0 : index
    %c0_7 = arith.constant 0 : index
    %5 = vector.load %arg4[%c0_6, %c0_7] : memref<16x32xf32, #tpu.memory_space<vmem>>, vector<16x32xf32>
    tpu.vector_store %arg4[%c0_6, %c0_7], %4 {strides = array<i32>} : memref<16x32xf32, #tpu.memory_space<vmem>>, vector<16x32xf32>,
    return
  }
  func.func @transform_0(%arg0: i32) -> (i32, i32) {
    %c0_i32 = arith.constant 0 : i32
    %c0_i32_0 = arith.constant 0 : i32
    return %arg0, %c0_i32 : i32, i32
  }
  func.func @transform_1(%arg0: i32) -> (i32, i32) {
    %c0_i32 = arith.constant 0 : i32
    %c0_i32_0 = arith.constant 0 : i32
    %c0_i32_1 = arith.constant 0 : i32
    return %c0_i32, %c0_i32_0 : i32, i32
  }
  func.func @transform_2(%arg0: i32) -> (i32, i32) {
    %c0_i32 = arith.constant 0 : i32
    %c0_i32_0 = arith.constant 0 : i32
    %c0_i32_1 = arith.constant 0 : i32
    return %c0_i32, %c0_i32_0 : i32, i32
  }
  func.func @transform_3(%arg0: i32) -> (i32, i32) {
    %c0_i32 = arith.constant 0 : i32
    %c0_i32_0 = arith.constant 0 : i32
    return %arg0, %c0_i32 : i32, i32
  }
}

module attributes {stable_mosaic.version = 11 : i64} {
  func.func @_lora_kernel(%arg0: i32, %arg1: memref<16x32xf32, #tpu.memory_space<vmem>>, %arg2: memref<4x32xf32, #tpu.memory_space<vmem>>, %arg3: memref<4x32xf32, #tpu.memory_space<vmem>>, %arg4: memref<16x32xf32, #tpu.memory_space<vmem>>) attributes {dimension_semantics = [#tpu.dimension_semantics<parallel>], iteration_bounds = array<i64: 1>, scalar_prefetch = 0 : i64, scratch_operands = 0 : i64, tpu.core_type = #tpu.core_type<tc>, window_params = [{transform_indices = @transform_0, window_bounds = array<i64: 16, 32>}, {pipeline_mode = #tpu.pipeline_mode<synchronous>, transform_indices = @transform_1, window_bounds = array<i64: 4, 32>}, {pipeline_mode = #tpu.pipeline_mode<synchronous>, transform_indices = @transform_2, window_bounds = array<i64: 4, 32>}, {transform_indices = @transform_3, window_bounds = array<i64: 16, 32>}]} {
    %c0 = arith.constant 0 : index
    %c0_0 = arith.constant 0 : index
    %0 = vector.load %arg1[%c0, %c0_0] : memref<16x32xf32, #tpu.memory_space<vmem>>, vector<16x32xf32>
    %c0_1 = arith.constant 0 : index
    %c0_2 = arith.constant 0 : index
    %1 = vector.load %arg2[%c0_1, %c0_2] : memref<4x32xf32, #tpu.memory_space<vmem>>, vector<4x32xf32>
    %cst = arith.constant dense<0.000000e+00> : vector<16x4xf32>
    %2 = tpu.matmul %0, %1, %cst {dimension_numbers = #tpu.dot_dimension_numbers<[1], [1], [0], [0], [0, 0, 1, 0], [], []>} : vector<16x32xf32>, vector<4x32xf32>, vector<16x4xf32> -> vector<16x4xf32>
    %c0_3 = arith.constant 0 : index
    %c0_4 = arith.constant 0 : index
    %3 = vector.load %arg3[%c0_3, %c0_4] : memref<4x32xf32, #tpu.memory_space<vmem>>, vector<4x32xf32>
    %cst_5 = arith.constant dense<0.000000e+00> : vector<16x32xf32>
    %4 = tpu.matmul %2, %3, %cst_5 {dimension_numbers = #tpu.dot_dimension_numbers<[1], [0], [0], [1], [0, 0, 1, 1], [], []>} : vector<16x4xf32>, vector<4x32xf32>, vector<16x32xf32> -> vector<16x32xf32>
    %c0_6 = arith.constant 0 : index
    %c0_7 = arith.constant 0 : index
    %5 = vector.load %arg4[%c0_6, %c0_7] : memref<16x32xf32, #tpu.memory_space<vmem>>, vector<16x32xf32>
    tpu.vector_store %arg4[%c0_6, %c0_7], %4 {strides = array<i32>} : memref<16x32xf32, #tpu.memory_space<vmem>>, vector<16x32xf32>,
    return
  }
  func.func @transform_0(%arg0: i32) -> (i32, i32) {
    %c0_i32 = arith.constant 0 : i32
    %c0_i32_0 = arith.constant 0 : i32
    return %arg0, %c0_i32 : i32, i32
  }
  func.func @transform_1(%arg0: i32) -> (i32, i32) {
    %c0_i32 = arith.constant 0 : i32
    %c0_i32_0 = arith.constant 0 : i32
    %c0_i32_1 = arith.constant 0 : i32
    return %c0_i32, %c0_i32_0 : i32, i32
  }
  func.func @transform_2(%arg0: i32) -> (i32, i32) {
    %c0_i32 = arith.constant 0 : i32
    %c0_i32_0 = arith.constant 0 : i32
    %c0_i32_1 = arith.constant 0 : i32
    return %c0_i32, %c0_i32_0 : i32, i32
  }
  func.func @transform_3(%arg0: i32) -> (i32, i32) {
    %c0_i32 = arith.constant 0 : i32
    %c0_i32_0 = arith.constant 0 : i32
    return %arg0, %c0_i32 : i32, i32
  }
}

</mosaic_0001>

<llo_original>
// kernel: _lora_forward.1
$region0: #{_lora_forward.1}
  #allocation0 [shape = 'u32[]', space=smem, size = 0x4, offset = 0x4, fixed_abs, tag = 'smem constant byte address 0x4 - core index']
  #allocation1 [shape = 'u32[144,128]{1,0:T(1,128)}', space=vmem, size = 0x12000, scoped, tag = 'internal scratch']
  %s0 = inlined_call_operand.hbm [shape: f32[16,32], index: 0, kind: input, shape index: {}]
  %s1 = inlined_call_operand.vmem [shape: f32[4,32], index: 1, kind: input, shape index: {}]
  %s2 = inlined_call_operand.hbm [shape: f32[4,32], index: 2, kind: input, shape index: {}]
  %s3 = inlined_call_operand.hbm [shape: f32[16,32], index: 3, kind: output, shape index: {}]
  %s4 = sld [smem:[#allocation0]]
  $region30: #{_lora_forward.1} parent=0
    _
  %s6 = ssub.s32 1, %s4
  %s7 = scalar_select 0, %s6, %s4
  $region1: #{_lora_forward.1} parent=0
    #allocation2 [shape = 'u8[8192]{0}', space=vmem, size = 0x2000, scoped, tag = 'input window, operand 0, single buffered']
    #allocation3 [shape = 's32[1]{0}', space=sflag, size = 0x4, scoped, tag = 'scoped memory for _lora_forward.1']
    #allocation4 [shape = 's32[1]{0}', space=sflag, size = 0x4, scoped, tag = 'scoped memory for _lora_forward.1']
    #allocation5 [shape = 'u8[2048]{0}', space=vmem, size = 0x800, scoped, tag = 'input window, operand 2, single buffered']
    #allocation6 [shape = 's32[1]{0}', space=sflag, size = 0x4, scoped, tag = 'scoped memory for _lora_forward.1']
    #allocation7 [shape = 'u8[8192]{0}', space=vmem, size = 0x2000, scoped, tag = 'output window, operand 0, single buffered']
    %8 = vsyncpa [#allocation3], 0
    %9 = vsyncpa [#allocation6], 0
    %10 = vsyncpa [#allocation4], 0
    // Predicated region
    $region2: #{_lora_forward.1} parent=1 // pred_check
      _
    $region3: #{_lora_forward.1} parent=1 // pred_check_branch
      %12 = sbr.rel (0) target = $region5
    $region4: #{_lora_forward.1} parent=1 // pred_region
      %s14 = ssub.s32 256, 256
      %15 = vsyncadd [#allocation3], %s14
      %s16 = sshll.u32 [#allocation2], 4
      %s17 = int_to_ptr.vmem [resolvable:$true] %s16
      %22 = dma.hbm_to_vmem [thread:$0]  %s0, 256, %s17, [#allocation3], 128, 128, 8
    $region5: #{_lora_forward.1} parent=1 // pred_fallthru
      _
    // Predicated region
    $region6: #{_lora_forward.1} parent=1 // pred_check
      _
    $region7: #{_lora_forward.1} parent=1 // pred_check_branch
      %24 = sbr.rel (0) target = $region9
    $region8: #{_lora_forward.1} parent=1 // pred_region
      _
    $region9: #{_lora_forward.1} parent=1 // pred_fallthru
      _
    // Predicated region
    $region10: #{_lora_forward.1} parent=1 // pred_check
      _
    $region11: #{_lora_forward.1} parent=1 // pred_check_branch
      %26 = sbr.rel (0) target = $region13
    $region12: #{_lora_forward.1} parent=1 // pred_region
      %s28 = ssub.s32 64, 64
      %29 = vsyncadd [#allocation6], %s28
      %s31 = sshll.u32 [#allocation5], 4
      %s32 = int_to_ptr.vmem [resolvable:$true] %s31
      %34 = dma.hbm_to_vmem [thread:$0]  %s2, 64, %s32, [#allocation6]
    $region13: #{_lora_forward.1} parent=1 // pred_fallthru
      _
    // Predicated region
    $region14: #{_lora_forward.1} parent=1 // pred_check
      _
    $region15: #{_lora_forward.1} parent=1 // pred_check_branch
      %36 = sbr.rel (0) target = $region17
    $region16: #{_lora_forward.1} parent=1 // pred_region
      %37 = dma.done [#allocation3], 256
    $region17: #{_lora_forward.1} parent=1 // pred_fallthru
      _
    // Predicated region
    $region18: #{_lora_forward.1} parent=1 // pred_check
      _
    $region19: #{_lora_forward.1} parent=1 // pred_check_branch
      %39 = sbr.rel (0) target = $region21
    $region20: #{_lora_forward.1} parent=1 // pred_region
      %40 = dma.done [#allocation6], 64
    $region21: #{_lora_forward.1} parent=1 // pred_fallthru
      _
    %v41 = vld [vmem:[#allocation2] sm:$0xff]
    %v42 = vld [vmem:[#allocation2 + $0x8] sm:$0xff]
    %v43 = vld [vmem:[%s1] sm:$0xf]
    %vm44 = vcmask 261120
    %v46 = vsel %vm44, %v41, 0
    %v49 = vsel %vm44, %v42, 0
    %v52 = vsel %vm44, %v43, 0
    %54 = vmatprep.subr.mxu0 0.0
    %55 = vmatpush1.xpose.msra.mxu0 0.0
    %56 = vmatprep.subr.mxu0 0.0
    %57 = vmatpush1.xpose.msra.mxu0 0.0
    %58 = vmatprep.subr.mxu0 0.0
    %59 = vmatpush1.xpose.msra.mxu0 0.0
    %60 = vmatprep.subr.mxu0 0.0
    %61 = vmatpush1.xpose.msra.mxu0 0.0
    %62 = vmatprep.subr.mxu0 0.0
    %63 = vmatpush1.xpose.msra.mxu0 0.0
    %64 = vmatprep.subr.mxu0 0.0
    %65 = vmatpush1.xpose.msra.mxu0 0.0
    %66 = vmatprep.subr.mxu0 0.0
    %67 = vmatpush1.xpose.msra.mxu0 0.0
    %68 = vmatprep.subr.mxu0 0.0
    %69 = vmatpush1.xpose.msra.mxu0 0.0
    %70 = vmatprep.subr.mxu0 0.0
    %71 = vmatpush1.xpose.msra.mxu0 0.0
    %72 = vmatprep.subr.mxu0 0.0
    %73 = vmatpush1.xpose.msra.mxu0 0.0
    %74 = vmatprep.subr.mxu0 0.0
    %75 = vmatpush1.xpose.msra.mxu0 0.0
    %76 = vmatprep.subr.mxu0 0.0
    %77 = vmatpush1.xpose.msra.mxu0 0.0
    %78 = vmatprep.subr.mxu0 0.0
    %79 = vmatpush1.xpose.msra.mxu0 0.0
    %80 = vmatprep.subr.mxu0 0.0
    %81 = vmatpush1.xpose.msra.mxu0 0.0
    %82 = vmatprep.subr.mxu0 0.0
    %83 = vmatpush1.xpose.msra.mxu0 0.0
    %84 = vmatprep.subr.mxu0 0.0
    %85 = vmatpush1.xpose.msra.mxu0 %v52
    %86 = vmatprep.subr.mxu0 0.0
    %87 = vmatpush2.xpose.msra.mxu0 0.0
    %88 = vmatprep.subr.mxu0 0.0
    %89 = vmatpush2.xpose.msra.mxu0 0.0
    %90 = vmatprep.subr.mxu0 0.0
    %91 = vmatpush2.xpose.msra.mxu0 0.0
    %92 = vmatprep.subr.mxu0 0.0
    %93 = vmatpush2.xpose.msra.mxu0 0.0
    %94 = vmatprep.subr.mxu0 0.0
    %95 = vmatpush2.xpose.msra.mxu0 0.0
    %96 = vmatprep.subr.mxu0 0.0
    %97 = vmatpush2.xpose.msra.mxu0 0.0
    %98 = vmatprep.subr.mxu0 0.0
    %99 = vmatpush2.xpose.msra.mxu0 0.0
    %100 = vmatprep.subr.mxu0 0.0
    %101 = vmatpush2.xpose.msra.mxu0 0.0
    %102 = vmatprep.subr.mxu0 0.0
    %103 = vmatpush2.xpose.msra.mxu0 0.0
    %104 = vmatprep.subr.mxu0 0.0
    %105 = vmatpush2.xpose.msra.mxu0 0.0
    %106 = vmatprep.subr.mxu0 0.0
    %107 = vmatpush2.xpose.msra.mxu0 0.0
    %108 = vmatprep.subr.mxu0 0.0
    %109 = vmatpush2.xpose.msra.mxu0 0.0
    %110 = vmatprep.subr.mxu0 0.0
    %111 = vmatpush2.xpose.msra.mxu0 0.0
    %112 = vmatprep.subr.mxu0 0.0
    %113 = vmatpush2.xpose.msra.mxu0 0.0
    %114 = vmatprep.subr.mxu0 0.0
    %115 = vmatpush2.xpose.msra.mxu0 0.0
    %116 = vmatprep.subr.mxu0 0.0
    %117 = vmatpush2.xpose.msra.mxu0 0.0
    %118 = vmatprep.mubr.f32.mxu0 0.0
    %119 = vmatmul.mubr.f32.gmra.mxu0 %v46
    %v120 = vpop.f32.mrf.mxu0
    %v121 = vadd.f32 0.0, %v120
    %v122 = vpop.f32.mrf.mxu0
    %123 = vmatprep.mubr.f32.mxu0 0.0
    %124 = vmatmul.mubr.f32.gmra.mxu0 %v49
    %v125 = vpop.f32.mrf.mxu0
    %v126 = vadd.f32 0.0, %v125
    %v127 = vpop.f32.mrf.mxu0
    %128 = vdwg.mxu0
    %v129 = vld [vmem:[#allocation5] sm:$0xf]
    %vm130 = vcmask 31744
    %v132 = vsel %vm130, %v121, 0
    %v135 = vsel %vm130, %v126, 0
    %vm137 = vcmask 1043456
    %v139 = vsel %vm137, %v129, 0
    %141 = vmatprep.subr.mxu0 0.0
    %142 = vmatpush1.msra.mxu0 0.0
    %143 = vmatprep.subr.mxu0 0.0
    %144 = vmatpush1.msra.mxu0 0.0
    %145 = vmatprep.subr.mxu0 0.0
    %146 = vmatpush1.msra.mxu0 0.0
    %147 = vmatprep.subr.mxu0 0.0
    %148 = vmatpush1.msra.mxu0 0.0
    %149 = vmatprep.subr.mxu0 0.0
    %150 = vmatpush1.msra.mxu0 0.0
    %151 = vmatprep.subr.mxu0 0.0
    %152 = vmatpush1.msra.mxu0 0.0
    %153 = vmatprep.subr.mxu0 0.0
    %154 = vmatpush1.msra.mxu0 0.0
    %155 = vmatprep.subr.mxu0 0.0
    %156 = vmatpush1.msra.mxu0 0.0
    %157 = vmatprep.subr.mxu0 0.0
    %158 = vmatpush1.msra.mxu0 0.0
    %159 = vmatprep.subr.mxu0 0.0
    %160 = vmatpush1.msra.mxu0 0.0
    %161 = vmatprep.subr.mxu0 0.0
    %162 = vmatpush1.msra.mxu0 0.0
    %163 = vmatprep.subr.mxu0 0.0
    %164 = vmatpush1.msra.mxu0 0.0
    %165 = vmatprep.subr.mxu0 0.0
    %166 = vmatpush1.msra.mxu0 0.0
    %167 = vmatprep.subr.mxu0 0.0
    %168 = vmatpush1.msra.mxu0 0.0
    %169 = vmatprep.subr.mxu0 0.0
    %170 = vmatpush1.msra.mxu0 0.0
    %171 = vmatprep.subr.mxu0 0.0
    %172 = vmatpush1.msra.mxu0 %v139
    %173 = vmatprep.subr.mxu0 0.0
    %174 = vmatpush2.msra.mxu0 0.0
    %175 = vmatprep.subr.mxu0 0.0
    %176 = vmatpush2.msra.mxu0 0.0
    %177 = vmatprep.subr.mxu0 0.0
    %178 = vmatpush2.msra.mxu0 0.0
    %179 = vmatprep.subr.mxu0 0.0
    %180 = vmatpush2.msra.mxu0 0.0
    %181 = vmatprep.subr.mxu0 0.0
    %182 = vmatpush2.msra.mxu0 0.0
    %183 = vmatprep.subr.mxu0 0.0
    %184 = vmatpush2.msra.mxu0 0.0
    %185 = vmatprep.subr.mxu0 0.0
    %186 = vmatpush2.msra.mxu0 0.0
    %187 = vmatprep.subr.mxu0 0.0
    %188 = vmatpush2.msra.mxu0 0.0
    %189 = vmatprep.subr.mxu0 0.0
    %190 = vmatpush2.msra.mxu0 0.0
    %191 = vmatprep.subr.mxu0 0.0
    %192 = vmatpush2.msra.mxu0 0.0
    %193 = vmatprep.subr.mxu0 0.0
    %194 = vmatpush2.msra.mxu0 0.0
    %195 = vmatprep.subr.mxu0 0.0
    %196 = vmatpush2.msra.mxu0 0.0
    %197 = vmatprep.subr.mxu0 0.0
    %198 = vmatpush2.msra.mxu0 0.0
    %199 = vmatprep.subr.mxu0 0.0
    %200 = vmatpush2.msra.mxu0 0.0
    %201 = vmatprep.subr.mxu0 0.0
    %202 = vmatpush2.msra.mxu0 0.0
    %203 = vmatprep.subr.mxu0 0.0
    %204 = vmatpush2.msra.mxu0 0.0
    %205 = vmatprep.mubr.f32.mxu0 0.0
    %206 = vmatmul.mubr.f32.gmra.mxu0 %v132
    %v207 = vpop.f32.mrf.mxu0
    %v208 = vadd.f32 0.0, %v207
    %v209 = vpop.f32.mrf.mxu0
    %210 = vmatprep.mubr.f32.mxu0 0.0
    %211 = vmatmul.mubr.f32.gmra.mxu0 %v135
    %v212 = vpop.f32.mrf.mxu0
    %v213 = vadd.f32 0.0, %v212
    %v214 = vpop.f32.mrf.mxu0
    %215 = vdwg.mxu0
    %216 = vst.msk [vmem:[#allocation7] sm:$0xff] %vm44, %v208
    %217 = vst.msk [vmem:[#allocation7 + $0x8] sm:$0xff] %vm44, %v213
    // Predicated region
    $region22: #{_lora_forward.1} parent=1 // pred_check
      _
    $region23: #{_lora_forward.1} parent=1 // pred_check_branch
      %219 = sbr.rel (0) target = $region25
    $region24: #{_lora_forward.1} parent=1 // pred_region
      %s221 = ssub.s32 256, 256
      %222 = vsyncadd [#allocation4], %s221
      %s223 = sshll.u32 [#allocation7], 4
      %s224 = int_to_ptr.vmem [resolvable:$true] %s223
      %229 = dma.vmem_to_hbm [thread:$0]  %s224, 256, %s3, [#allocation4], 128, 128, 8
    $region25: #{_lora_forward.1} parent=1 // pred_fallthru
      _
    // Predicated region
    $region26: #{_lora_forward.1} parent=1 // pred_check
      _
    $region27: #{_lora_forward.1} parent=1 // pred_check_branch
      %231 = sbr.rel (0) target = $region29
    $region28: #{_lora_forward.1} parent=1 // pred_region
      %232 = dma.done [#allocation4], 256
    $region29: #{_lora_forward.1} parent=1 // pred_fallthru
      _
    %233 = vsyncpa [#allocation3], 1
    %234 = vsyncpa [#allocation6], 1
    %235 = vsyncpa [#allocation4], 1

// kernel: _lora_forward.1
$region0: #{_lora_forward.1}
  #allocation0 [shape = 'u32[]', space=smem, size = 0x4, offset = 0x4, fixed_abs, tag = 'smem constant byte address 0x4 - core index']
  #allocation1 [shape = 'u32[144,128]{1,0:T(1,128)}', space=vmem, size = 0x12000, scoped, tag = 'internal scratch']
  %s0 = inlined_call_operand.hbm [shape: f32[16,32], index: 0, kind: input, shape index: {}]
  %s1 = inlined_call_operand.vmem [shape: f32[4,32], index: 1, kind: input, shape index: {}]
  %s2 = inlined_call_operand.hbm [shape: f32[4,32], index: 2, kind: input, shape index: {}]
  %s3 = inlined_call_operand.hbm [shape: f32[16,32], index: 3, kind: output, shape index: {}]
  %s4 = sld [smem:[#allocation0]]
  $region30: #{_lora_forward.1} parent=0
    _
  %s6 = ssub.s32 1, %s4
  %s7 = scalar_select 0, %s6, %s4
  $region1: #{_lora_forward.1} parent=0
    #allocation2 [shape = 'u8[8192]{0}', space=vmem, size = 0x2000, scoped, tag = 'input window, operand 0, single buffered']
    #allocation3 [shape = 's32[1]{0}', space=sflag, size = 0x4, scoped, tag = 'scoped memory for _lora_forward.1']
    #allocation4 [shape = 's32[1]{0}', space=sflag, size = 0x4, scoped, tag = 'scoped memory for _lora_forward.1']
    #allocation5 [shape = 'u8[2048]{0}', space=vmem, size = 0x800, scoped, tag = 'input window, operand 2, single buffered']
    #allocation6 [shape = 's32[1]{0}', space=sflag, size = 0x4, scoped, tag = 'scoped memory for _lora_forward.1']
    #allocation7 [shape = 'u8[8192]{0}', space=vmem, size = 0x2000, scoped, tag = 'output window, operand 0, single buffered']
    %8 = vsyncpa [#allocation3], 0
    %9 = vsyncpa [#allocation6], 0
    %10 = vsyncpa [#allocation4], 0
    // Predicated region
    $region2: #{_lora_forward.1} parent=1 // pred_check
      _
    $region3: #{_lora_forward.1} parent=1 // pred_check_branch
      %12 = sbr.rel (0) target = $region5
    $region4: #{_lora_forward.1} parent=1 // pred_region
      %s14 = ssub.s32 256, 256
      %15 = vsyncadd [#allocation3], %s14
      %s16 = sshll.u32 [#allocation2], 4
      %s17 = int_to_ptr.vmem [resolvable:$true] %s16
      %22 = dma.hbm_to_vmem [thread:$0]  %s0, 256, %s17, [#allocation3], 128, 128, 8
    $region5: #{_lora_forward.1} parent=1 // pred_fallthru
      _
    // Predicated region
    $region6: #{_lora_forward.1} parent=1 // pred_check
      _
    $region7: #{_lora_forward.1} parent=1 // pred_check_branch
      %24 = sbr.rel (0) target = $region9
    $region8: #{_lora_forward.1} parent=1 // pred_region
      _
    $region9: #{_lora_forward.1} parent=1 // pred_fallthru
      _
    // Predicated region
    $region10: #{_lora_forward.1} parent=1 // pred_check
      _
    $region11: #{_lora_forward.1} parent=1 // pred_check_branch
      %26 = sbr.rel (0) target = $region13
    $region12: #{_lora_forward.1} parent=1 // pred_region
      %s28 = ssub.s32 64, 64
      %29 = vsyncadd [#allocation6], %s28
      %s31 = sshll.u32 [#allocation5], 4
      %s32 = int_to_ptr.vmem [resolvable:$true] %s31
      %34 = dma.hbm_to_vmem [thread:$0]  %s2, 64, %s32, [#allocation6]
    $region13: #{_lora_forward.1} parent=1 // pred_fallthru
      _
    // Predicated region
    $region14: #{_lora_forward.1} parent=1 // pred_check
      _
    $region15: #{_lora_forward.1} parent=1 // pred_check_branch
      %36 = sbr.rel (0) target = $region17
    $region16: #{_lora_forward.1} parent=1 // pred_region
      %37 = dma.done [#allocation3], 256
    $region17: #{_lora_forward.1} parent=1 // pred_fallthru
      _
    // Predicated region
    $region18: #{_lora_forward.1} parent=1 // pred_check
      _
    $region19: #{_lora_forward.1} parent=1 // pred_check_branch
      %39 = sbr.rel (0) target = $region21
    $region20: #{_lora_forward.1} parent=1 // pred_region
      %40 = dma.done [#allocation6], 64
    $region21: #{_lora_forward.1} parent=1 // pred_fallthru
      _
    %v41 = vld [vmem:[#allocation2] sm:$0xff]
    %v42 = vld [vmem:[#allocation2 + $0x8] sm:$0xff]
    %v43 = vld [vmem:[%s1] sm:$0xf]
    %vm44 = vcmask 261120
    %v46 = vsel %vm44, %v41, 0
    %v49 = vsel %vm44, %v42, 0
    %v52 = vsel %vm44, %v43, 0
    %54 = vmatprep.subr.mxu0 0.0
    %55 = vmatpush1.xpose.msra.mxu0 0.0
    %56 = vmatprep.subr.mxu0 0.0
    %57 = vmatpush1.xpose.msra.mxu0 0.0
    %58 = vmatprep.subr.mxu0 0.0
    %59 = vmatpush1.xpose.msra.mxu0 0.0
    %60 = vmatprep.subr.mxu0 0.0
    %61 = vmatpush1.xpose.msra.mxu0 0.0
    %62 = vmatprep.subr.mxu0 0.0
    %63 = vmatpush1.xpose.msra.mxu0 0.0
    %64 = vmatprep.subr.mxu0 0.0
    %65 = vmatpush1.xpose.msra.mxu0 0.0
    %66 = vmatprep.subr.mxu0 0.0
    %67 = vmatpush1.xpose.msra.mxu0 0.0
    %68 = vmatprep.subr.mxu0 0.0
    %69 = vmatpush1.xpose.msra.mxu0 0.0
    %70 = vmatprep.subr.mxu0 0.0
    %71 = vmatpush1.xpose.msra.mxu0 0.0
    %72 = vmatprep.subr.mxu0 0.0
    %73 = vmatpush1.xpose.msra.mxu0 0.0
    %74 = vmatprep.subr.mxu0 0.0
    %75 = vmatpush1.xpose.msra.mxu0 0.0
    %76 = vmatprep.subr.mxu0 0.0
    %77 = vmatpush1.xpose.msra.mxu0 0.0
    %78 = vmatprep.subr.mxu0 0.0
    %79 = vmatpush1.xpose.msra.mxu0 0.0
    %80 = vmatprep.subr.mxu0 0.0
    %81 = vmatpush1.xpose.msra.mxu0 0.0
    %82 = vmatprep.subr.mxu0 0.0
    %83 = vmatpush1.xpose.msra.mxu0 0.0
    %84 = vmatprep.subr.mxu0 0.0
    %85 = vmatpush1.xpose.msra.mxu0 %v52
    %86 = vmatprep.subr.mxu0 0.0
    %87 = vmatpush2.xpose.msra.mxu0 0.0
    %88 = vmatprep.subr.mxu0 0.0
    %89 = vmatpush2.xpose.msra.mxu0 0.0
    %90 = vmatprep.subr.mxu0 0.0
    %91 = vmatpush2.xpose.msra.mxu0 0.0
    %92 = vmatprep.subr.mxu0 0.0
    %93 = vmatpush2.xpose.msra.mxu0 0.0
    %94 = vmatprep.subr.mxu0 0.0
    %95 = vmatpush2.xpose.msra.mxu0 0.0
    %96 = vmatprep.subr.mxu0 0.0
    %97 = vmatpush2.xpose.msra.mxu0 0.0
    %98 = vmatprep.subr.mxu0 0.0
    %99 = vmatpush2.xpose.msra.mxu0 0.0
    %100 = vmatprep.subr.mxu0 0.0
    %101 = vmatpush2.xpose.msra.mxu0 0.0
    %102 = vmatprep.subr.mxu0 0.0
    %103 = vmatpush2.xpose.msra.mxu0 0.0
    %104 = vmatprep.subr.mxu0 0.0
    %105 = vmatpush2.xpose.msra.mxu0 0.0
    %106 = vmatprep.subr.mxu0 0.0
    %107 = vmatpush2.xpose.msra.mxu0 0.0
    %108 = vmatprep.subr.mxu0 0.0
    %109 = vmatpush2.xpose.msra.mxu0 0.0
    %110 = vmatprep.subr.mxu0 0.0
    %111 = vmatpush2.xpose.msra.mxu0 0.0
    %112 = vmatprep.subr.mxu0 0.0
    %113 = vmatpush2.xpose.msra.mxu0 0.0
    %114 = vmatprep.subr.mxu0 0.0
    %115 = vmatpush2.xpose.msra.mxu0 0.0
    %116 = vmatprep.subr.mxu0 0.0
    %117 = vmatpush2.xpose.msra.mxu0 0.0
    %118 = vmatprep.mubr.f32.mxu0 0.0
    %119 = vmatmul.mubr.f32.gmra.mxu0 %v46
    %v120 = vpop.f32.mrf.mxu0
    %v121 = vadd.f32 0.0, %v120
    %v122 = vpop.f32.mrf.mxu0
    %123 = vmatprep.mubr.f32.mxu0 0.0
    %124 = vmatmul.mubr.f32.gmra.mxu0 %v49
    %v125 = vpop.f32.mrf.mxu0
    %v126 = vadd.f32 0.0, %v125
    %v127 = vpop.f32.mrf.mxu0
    %128 = vdwg.mxu0
    %v129 = vld [vmem:[#allocation5] sm:$0xf]
    %vm130 = vcmask 31744
    %v132 = vsel %vm130, %v121, 0
    %v135 = vsel %vm130, %v126, 0
    %vm137 = vcmask 1043456
    %v139 = vsel %vm137, %v129, 0
    %141 = vmatprep.subr.mxu0 0.0
    %142 = vmatpush1.msra.mxu0 0.0
    %143 = vmatprep.subr.mxu0 0.0
    %144 = vmatpush1.msra.mxu0 0.0
    %145 = vmatprep.subr.mxu0 0.0
    %146 = vmatpush1.msra.mxu0 0.0
    %147 = vmatprep.subr.mxu0 0.0
    %148 = vmatpush1.msra.mxu0 0.0
    %149 = vmatprep.subr.mxu0 0.0
    %150 = vmatpush1.msra.mxu0 0.0
    %151 = vmatprep.subr.mxu0 0.0
    %152 = vmatpush1.msra.mxu0 0.0
    %153 = vmatprep.subr.mxu0 0.0
    %154 = vmatpush1.msra.mxu0 0.0
    %155 = vmatprep.subr.mxu0 0.0
    %156 = vmatpush1.msra.mxu0 0.0
    %157 = vmatprep.subr.mxu0 0.0
    %158 = vmatpush1.msra.mxu0 0.0
    %159 = vmatprep.subr.mxu0 0.0
    %160 = vmatpush1.msra.mxu0 0.0
    %161 = vmatprep.subr.mxu0 0.0
    %162 = vmatpush1.msra.mxu0 0.0
    %163 = vmatprep.subr.mxu0 0.0
    %164 = vmatpush1.msra.mxu0 0.0
    %165 = vmatprep.subr.mxu0 0.0
    %166 = vmatpush1.msra.mxu0 0.0
    %167 = vmatprep.subr.mxu0 0.0
    %168 = vmatpush1.msra.mxu0 0.0
    %169 = vmatprep.subr.mxu0 0.0
    %170 = vmatpush1.msra.mxu0 0.0
    %171 = vmatprep.subr.mxu0 0.0
    %172 = vmatpush1.msra.mxu0 %v139
    %173 = vmatprep.subr.mxu0 0.0
    %174 = vmatpush2.msra.mxu0 0.0
    %175 = vmatprep.subr.mxu0 0.0
    %176 = vmatpush2.msra.mxu0 0.0
    %177 = vmatprep.subr.mxu0 0.0
    %178 = vmatpush2.msra.mxu0 0.0
    %179 = vmatprep.subr.mxu0 0.0
    %180 = vmatpush2.msra.mxu0 0.0
    %181 = vmatprep.subr.mxu0 0.0
    %182 = vmatpush2.msra.mxu0 0.0
    %183 = vmatprep.subr.mxu0 0.0
    %184 = vmatpush2.msra.mxu0 0.0
    %185 = vmatprep.subr.mxu0 0.0
    %186 = vmatpush2.msra.mxu0 0.0
    %187 = vmatprep.subr.mxu0 0.0
    %188 = vmatpush2.msra.mxu0 0.0
    %189 = vmatprep.subr.mxu0 0.0
    %190 = vmatpush2.msra.mxu0 0.0
    %191 = vmatprep.subr.mxu0 0.0
    %192 = vmatpush2.msra.mxu0 0.0
    %193 = vmatprep.subr.mxu0 0.0
    %194 = vmatpush2.msra.mxu0 0.0
    %195 = vmatprep.subr.mxu0 0.0
    %196 = vmatpush2.msra.mxu0 0.0
    %197 = vmatprep.subr.mxu0 0.0
    %198 = vmatpush2.msra.mxu0 0.0
    %199 = vmatprep.subr.mxu0 0.0
    %200 = vmatpush2.msra.mxu0 0.0
    %201 = vmatprep.subr.mxu0 0.0
    %202 = vmatpush2.msra.mxu0 0.0
    %203 = vmatprep.subr.mxu0 0.0
    %204 = vmatpush2.msra.mxu0 0.0
    %205 = vmatprep.mubr.f32.mxu0 0.0
    %206 = vmatmul.mubr.f32.gmra.mxu0 %v132
    %v207 = vpop.f32.mrf.mxu0
    %v208 = vadd.f32 0.0, %v207
    %v209 = vpop.f32.mrf.mxu0
    %210 = vmatprep.mubr.f32.mxu0 0.0
    %211 = vmatmul.mubr.f32.gmra.mxu0 %v135
    %v212 = vpop.f32.mrf.mxu0
    %v213 = vadd.f32 0.0, %v212
    %v214 = vpop.f32.mrf.mxu0
    %215 = vdwg.mxu0
    %216 = vst.msk [vmem:[#allocation7] sm:$0xff] %vm44, %v208
    %217 = vst.msk [vmem:[#allocation7 + $0x8] sm:$0xff] %vm44, %v213
    // Predicated region
    $region22: #{_lora_forward.1} parent=1 // pred_check
      _
    $region23: #{_lora_forward.1} parent=1 // pred_check_branch
      %219 = sbr.rel (0) target = $region25
    $region24: #{_lora_forward.1} parent=1 // pred_region
      %s221 = ssub.s32 256, 256
      %222 = vsyncadd [#allocation4], %s221
      %s223 = sshll.u32 [#allocation7], 4
      %s224 = int_to_ptr.vmem [resolvable:$true] %s223
      %229 = dma.vmem_to_hbm [thread:$0]  %s224, 256, %s3, [#allocation4], 128, 128, 8
    $region25: #{_lora_forward.1} parent=1 // pred_fallthru
      _
    // Predicated region
    $region26: #{_lora_forward.1} parent=1 // pred_check
      _
    $region27: #{_lora_forward.1} parent=1 // pred_check_branch
      %231 = sbr.rel (0) target = $region29
    $region28: #{_lora_forward.1} parent=1 // pred_region
      %232 = dma.done [#allocation4], 256
    $region29: #{_lora_forward.1} parent=1 // pred_fallthru
      _
    %233 = vsyncpa [#allocation3], 1
    %234 = vsyncpa [#allocation6], 1
    %235 = vsyncpa [#allocation4], 1

</llo_original>
